<compile_context>
chip_gen: v7x
topology: tpu7x:2x2x1
jax: 0.10.0
libtpu: 0.0.40
codegen_flags: <defaults>
</compile_context>

<pallas_src>
import functools

import jax
import jax.numpy as jnp
from jax import lax
from jax.experimental import pallas as pl
from jax.experimental.pallas import tpu as pltpu

IN_DIM, HID_DIM, OUT_DIM = 11, 50, 2

# Contract the last dim of both operands (lhs @ rhs^T) -- well-trodden MXU path.
_NT_DIMS = (((1,), (1,)), ((), ()))


def _round_up(x, m):
    return ((x + m - 1) // m) * m


def _sigmoid(z):
    # Single EUP push per element (tanh) instead of exp + reciprocal.
    return 0.5 * jnp.tanh(0.5 * z) + 0.5


def mlp_kernel(x_ref, w1_ref, b1_ref, w2_ref, b2_ref, w3_ref, b3_ref, o_ref):
    # x_ref: (TB, 11) f32 in native layout.  Cast to bf16 in-kernel (VPU, free under the
    # EUP-bound sigmoids) and contract the feature axis of w1 (50, 11) against the
    # feature axis of the x tile -> (50, TB), i.e. already feature-on-sublanes /
    # batch-on-lanes for the rest of the MLP.
    x_bf = x_ref[...].astype(jnp.bfloat16)                                    # (TB, 11)
    h1 = lax.dot_general(w1_ref[...], x_bf, _NT_DIMS,
                         preferred_element_type=jnp.float32)                  # (50, TB) f32
    h1 = _sigmoid(h1 + b1_ref[...])                                           # lane-dense
    h2 = jnp.dot(w2_ref[...], h1.astype(jnp.bfloat16),
                 preferred_element_type=jnp.float32)                          # (50, TB)
    h2 = _sigmoid(h2 + b2_ref[...])
    out = jnp.dot(w3_ref[...], h2.astype(jnp.bfloat16),
                  preferred_element_type=jnp.float32) + b3_ref[...]           # (2, TB)
    o_ref[...] = out.astype(o_ref.dtype)                                      # lane-dense store


def _plan_batch_tiles(batch, tile_b):
    """Split `batch` into near-equal, 128-aligned tiles.

    * tail padding is < 128 rows per tile (no up-to-2x wasted sigmoid work near tile
      multiples),
    * the grid has >= 2 steps whenever the batch is big enough to split, so the
      "parallel" grid axis can be sharded across both TensorCores on v7x.
    """
    min_tiles = 2 if batch >= 256 else 1
    n_tiles = max(min_tiles, pl.cdiv(batch, tile_b))
    tb = _round_up(pl.cdiv(batch, n_tiles), 128)
    return n_tiles, tb


@functools.partial(jax.jit, static_argnames=("tile_b", "batch_major_output"))
def agent_forward(x, params, *, tile_b=4096, batch_major_output=False):
    """x: (B, 11) f32.  params: w* in PyTorch (out,in) layout (bf16), b* (out,1) f32.

    Returns (B, 2) f32 (PyTorch layout).  With batch_major_output=True, returns the
    lane-dense (2, B) slab directly and skips the small wrapper transpose pass.
    """
    B = x.shape[0]
    w1, b1 = params["w1"], params["b1"]
    w2, b2 = params["w2"], params["b2"]
    w3, b3 = params["w3"], params["b3"]

    n_tiles, tb = _plan_batch_tiles(max(B, 1), tile_b)
    b_pad = n_tiles * tb
    if b_pad != B:
        x = jnp.pad(x, ((0, b_pad - B), (0, 0)))

    def resident(arr):  # weights/biases: constant block index -> stay VMEM-resident
        return pl.BlockSpec(arr.shape, lambda i: (0,) * arr.ndim)

    flops = 2 * b_pad * (IN_DIM * HID_DIM + HID_DIM * HID_DIM + HID_DIM * OUT_DIM)
    bytes_accessed = (
        x.size * 4 + OUT_DIM * b_pad * 4
        + (w1.size + w2.size + w3.size) * 2
        + (b1.size + b2.size + b3.size) * 4
    )

    out_t = pl.pallas_call(
        mlp_kernel,
        out_shape=jax.ShapeDtypeStruct((OUT_DIM, b_pad), jnp.float32),
        grid=(n_tiles,),
        in_specs=[
            pl.BlockSpec((tb, IN_DIM), lambda i: (i, 0)),   # pipelined native-layout x tile
            resident(w1), resident(b1),
            resident(w2), resident(b2),
            resident(w3), resident(b3),
        ],
        out_specs=pl.BlockSpec((OUT_DIM, tb), lambda i: (0, i)),
        compiler_params=pltpu.CompilerParams(
            dimension_semantics=("parallel",),   # shard batch tiles across TCs (v7x)
        ),
        cost_estimate=pl.CostEstimate(
            flops=flops,
            transcendentals=2 * HID_DIM * b_pad,     # one tanh per hidden activation
            bytes_accessed=bytes_accessed,
        ),
    )(x, w1, b1, w2, b2, w3, b3)

    if batch_major_output:
        return out_t[:, :B]                                                   # (2, B)
    return out_t[:, :B].T                                                     # (B, 2)


def init_params(key):
    """PyTorch nn.Linear default init: U(-1/sqrt(fan_in), 1/sqrt(fan_in)) for W and b.
    Weights kept in PyTorch (out_features, in_features) layout, stored bf16 for the MXU."""
    def linear(k, fan_in, fan_out):
        kw, kb = jax.random.split(k)
        bound = 1.0 / jnp.sqrt(float(fan_in))
        w = jax.random.uniform(kw, (fan_out, fan_in), jnp.float32, -bound, bound)
        b = jax.random.uniform(kb, (fan_out, 1), jnp.float32, -bound, bound)
        return w.astype(jnp.bfloat16), b

    k1, k2, k3 = jax.random.split(key, 3)
    w1, b1 = linear(k1, IN_DIM, HID_DIM)
    w2, b2 = linear(k2, HID_DIM, HID_DIM)
    w3, b3 = linear(k3, HID_DIM, OUT_DIM)
    return {"w1": w1, "b1": b1, "w2": w2, "b2": b2, "w3": w3, "b3": b3}


def reference_forward(x, params):
    """Pure-JAX reference mirroring kernel numerics (bf16 matmul operands, f32 accumulate)."""
    def layer(h, w, b, act):
        hb = h.astype(jnp.bfloat16).astype(jnp.float32)
        wf = w.astype(jnp.float32)
        y = hb @ wf.T + b[:, 0]
        return jax.nn.sigmoid(y) if act else y

    h = layer(x, params["w1"], params["b1"], True)
    h = layer(h, params["w2"], params["b2"], True)
    return layer(h, params["w3"], params["b3"], False)


if __name__ == "__main__":
    key = jax.random.PRNGKey(0)
    kx, kp = jax.random.split(key)
    params = init_params(kp)

    # Small demo batch: each observation has 8 wall bits + x + y + GRAB = 11 features.
    B = 8
    x = jax.random.uniform(kx, (B, IN_DIM), jnp.float32)

    out = jax.block_until_ready(agent_forward(x, params))
    ref = reference_forward(x, params)
    assert out.shape == (B, OUT_DIM)
    assert jnp.allclose(out, ref, atol=2e-3, rtol=2e-3), "mismatch vs reference (B=8)"

    # Multi-tile pipelined path (grid >= 2 steps, uneven 128-aligned tail).
    B2 = 1000
    x2 = jax.random.uniform(jax.random.PRNGKey(1), (B2, IN_DIM), jnp.float32)
    out2 = jax.block_until_ready(agent_forward(x2, params))
    ref2 = reference_forward(x2, params)
    assert out2.shape == (B2, OUT_DIM)
    assert jnp.allclose(out2, ref2, atol=2e-3, rtol=2e-3), "mismatch vs reference (B=1000)"

    # Batch-major output path (review item 5a): lane-dense (2, B) slab, no wrapper transpose.
    out_bm = jax.block_until_ready(agent_forward(x2, params, batch_major_output=True))
    assert out_bm.shape == (OUT_DIM, B2)
    assert jnp.allclose(out_bm.T, ref2, atol=2e-3, rtol=2e-3), "mismatch (batch-major output)"

    # TODO(synk): Action/move/draw_Agent game-loop logic (pygame env interaction) is host
    # control flow, not part of forward(), and is intentionally not ported to Pallas.
    print("KERNEL_OK")
</pallas_src>

<mosaic_0001>
module attributes {stable_mosaic.version = 11 : i64} {
  func.func @mlp_kernel(%arg0: i32, %arg1: memref<128x11xf32, #tpu.memory_space<vmem>>, %arg2: memref<50x11xbf16, #tpu.memory_space<vmem>>, %arg3: memref<50x1xf32, #tpu.memory_space<vmem>>, %arg4: memref<50x50xbf16, #tpu.memory_space<vmem>>, %arg5: memref<50x1xf32, #tpu.memory_space<vmem>>, %arg6: memref<2x50xbf16, #tpu.memory_space<vmem>>, %arg7: memref<2x1xf32, #tpu.memory_space<vmem>>, %arg8: memref<2x128xf32, #tpu.memory_space<vmem>>) attributes {dimension_semantics = [#tpu.dimension_semantics<parallel>], iteration_bounds = array<i64: 1>, scalar_prefetch = 0 : i64, scratch_operands = 0 : i64, tpu.core_type = #tpu.core_type<tc>, window_params = [{transform_indices = @transform_0, window_bounds = array<i64: 128, 11>}, {pipeline_mode = #tpu.pipeline_mode<synchronous>, transform_indices = @transform_1, window_bounds = array<i64: 50, 11>}, {pipeline_mode = #tpu.pipeline_mode<synchronous>, transform_indices = @transform_2, window_bounds = array<i64: 50, 1>}, {pipeline_mode = #tpu.pipeline_mode<synchronous>, transform_indices = @transform_3, window_bounds = array<i64: 50, 50>}, {pipeline_mode = #tpu.pipeline_mode<synchronous>, transform_indices = @transform_4, window_bounds = array<i64: 50, 1>}, {pipeline_mode = #tpu.pipeline_mode<synchronous>, transform_indices = @transform_5, window_bounds = array<i64: 2, 50>}, {pipeline_mode = #tpu.pipeline_mode<synchronous>, transform_indices = @transform_6, window_bounds = array<i64: 2, 1>}, {transform_indices = @transform_7, window_bounds = array<i64: 2, 128>}]} {
    %c0 = arith.constant 0 : index
    %c0_0 = arith.constant 0 : index
    %0 = vector.load %arg1[%c0, %c0_0] : memref<128x11xf32, #tpu.memory_space<vmem>>, vector<128x11xf32>
    %1 = arith.truncf %0 : vector<128x11xf32> to vector<128x11xbf16>
    %c0_1 = arith.constant 0 : index
    %c0_2 = arith.constant 0 : index
    %2 = vector.load %arg2[%c0_1, %c0_2] : memref<50x11xbf16, #tpu.memory_space<vmem>>, vector<50x11xbf16>
    %cst = arith.constant dense<0.000000e+00> : vector<50x128xf32>
    %3 = tpu.matmul %2, %1, %cst {dimension_numbers = #tpu.dot_dimension_numbers<[1], [1], [0], [0], [0, 0, 1, 0], [], []>} : vector<50x11xbf16>, vector<128x11xbf16>, vector<50x128xf32> -> vector<50x128xf32>
    %c0_3 = arith.constant 0 : index
    %c0_4 = arith.constant 0 : index
    %4 = vector.load %arg3[%c0_3, %c0_4] : memref<50x1xf32, #tpu.memory_space<vmem>>, vector<50x1xf32>
    %5 = vector.broadcast %4 : vector<50x1xf32> to vector<50x128xf32>
    %6 = arith.addf %3, %5 : vector<50x128xf32>
    %cst_5 = arith.constant 5.000000e-01 : f32
    %7 = vector.broadcast %cst_5 : f32 to vector<50x128xf32>
    %8 = arith.mulf %7, %6 : vector<50x128xf32>
    %9 = math.tanh %8 : vector<50x128xf32>
    %cst_6 = arith.constant 5.000000e-01 : f32
    %10 = vector.broadcast %cst_6 : f32 to vector<50x128xf32>
    %11 = arith.mulf %10, %9 : vector<50x128xf32>
    %cst_7 = arith.constant 5.000000e-01 : f32
    %12 = vector.broadcast %cst_7 : f32 to vector<50x128xf32>
    %13 = arith.addf %11, %12 : vector<50x128xf32>
    %c0_8 = arith.constant 0 : index
    %c0_9 = arith.constant 0 : index
    %14 = vector.load %arg4[%c0_8, %c0_9] : memref<50x50xbf16, #tpu.memory_space<vmem>>, vector<50x50xbf16>
    %15 = arith.truncf %13 : vector<50x128xf32> to vector<50x128xbf16>
    %cst_10 = arith.constant dense<0.000000e+00> : vector<50x128xf32>
    %16 = tpu.matmul %14, %15, %cst_10 {dimension_numbers = #tpu.dot_dimension_numbers<[1], [0], [0], [1], [0, 0, 1, 1], [], []>} : vector<50x50xbf16>, vector<50x128xbf16>, vector<50x128xf32> -> vector<50x128xf32>
    %c0_11 = arith.constant 0 : index
    %c0_12 = arith.constant 0 : index
    %17 = vector.load %arg5[%c0_11, %c0_12] : memref<50x1xf32, #tpu.memory_space<vmem>>, vector<50x1xf32>
    %18 = vector.broadcast %17 : vector<50x1xf32> to vector<50x128xf32>
    %19 = arith.addf %16, %18 : vector<50x128xf32>
    %cst_13 = arith.constant 5.000000e-01 : f32
    %20 = vector.broadcast %cst_13 : f32 to vector<50x128xf32>
    %21 = arith.mulf %20, %19 : vector<50x128xf32>
    %22 = math.tanh %21 : vector<50x128xf32>
    %cst_14 = arith.constant 5.000000e-01 : f32
    %23 = vector.broadcast %cst_14 : f32 to vector<50x128xf32>
    %24 = arith.mulf %23, %22 : vector<50x128xf32>
    %cst_15 = arith.constant 5.000000e-01 : f32
    %25 = vector.broadcast %cst_15 : f32 to vector<50x128xf32>
    %26 = arith.addf %24, %25 : vector<50x128xf32>
    %c0_16 = arith.constant 0 : index
    %c0_17 = arith.constant 0 : index
    %27 = vector.load %arg6[%c0_16, %c0_17] : memref<2x50xbf16, #tpu.memory_space<vmem>>, vector<2x50xbf16>
    %28 = arith.truncf %26 : vector<50x128xf32> to vector<50x128xbf16>
    %cst_18 = arith.constant dense<0.000000e+00> : vector<2x128xf32>
    %29 = tpu.matmul %27, %28, %cst_18 {dimension_numbers = #tpu.dot_dimension_numbers<[1], [0], [0], [1], [0, 0, 1, 1], [], []>} : vector<2x50xbf16>, vector<50x128xbf16>, vector<2x128xf32> -> vector<2x128xf32>
    %c0_19 = arith.constant 0 : index
    %c0_20 = arith.constant 0 : index
    %30 = vector.load %arg7[%c0_19, %c0_20] : memref<2x1xf32, #tpu.memory_space<vmem>>, vector<2x1xf32>
    %31 = vector.broadcast %30 : vector<2x1xf32> to vector<2x128xf32>
    %32 = arith.addf %29, %31 : vector<2x128xf32>
    %c0_21 = arith.constant 0 : index
    %c0_22 = arith.constant 0 : index
    %33 = vector.load %arg8[%c0_21, %c0_22] : memref<2x128xf32, #tpu.memory_space<vmem>>, vector<2x128xf32>
    tpu.vector_store %arg8[%c0_21, %c0_22], %32 {strides = array<i32>} : memref<2x128xf32, #tpu.memory_space<vmem>>, vector<2x128xf32>,
    return
  }
  func.func @transform_0(%arg0: i32) -> (i32, i32) {
    %c0_i32 = arith.constant 0 : i32
    %c0_i32_0 = arith.constant 0 : i32
    return %arg0, %c0_i32 : i32, i32
  }
  func.func @transform_1(%arg0: i32) -> (i32, i32) {
    %c0_i32 = arith.constant 0 : i32
    %c0_i32_0 = arith.constant 0 : i32
    %c0_i32_1 = arith.constant 0 : i32
    return %c0_i32, %c0_i32_0 : i32, i32
  }
  func.func @transform_2(%arg0: i32) -> (i32, i32) {
    %c0_i32 = arith.constant 0 : i32
    %c0_i32_0 = arith.constant 0 : i32
    %c0_i32_1 = arith.constant 0 : i32
    return %c0_i32, %c0_i32_0 : i32, i32
  }
  func.func @transform_3(%arg0: i32) -> (i32, i32) {
    %c0_i32 = arith.constant 0 : i32
    %c0_i32_0 = arith.constant 0 : i32
    %c0_i32_1 = arith.constant 0 : i32
    return %c0_i32, %c0_i32_0 : i32, i32
  }
  func.func @transform_4(%arg0: i32) -> (i32, i32) {
    %c0_i32 = arith.constant 0 : i32
    %c0_i32_0 = arith.constant 0 : i32
    %c0_i32_1 = arith.constant 0 : i32
    return %c0_i32, %c0_i32_0 : i32, i32
  }
  func.func @transform_5(%arg0: i32) -> (i32, i32) {
    %c0_i32 = arith.constant 0 : i32
    %c0_i32_0 = arith.constant 0 : i32
    %c0_i32_1 = arith.constant 0 : i32
    return %c0_i32, %c0_i32_0 : i32, i32
  }
  func.func @transform_6(%arg0: i32) -> (i32, i32) {
    %c0_i32 = arith.constant 0 : i32
    %c0_i32_0 = arith.constant 0 : i32
    %c0_i32_1 = arith.constant 0 : i32
    return %c0_i32, %c0_i32_0 : i32, i32
  }
  func.func @transform_7(%arg0: i32) -> (i32, i32) {
    %c0_i32 = arith.constant 0 : i32
    %c0_i32_0 = arith.constant 0 : i32
    return %c0_i32, %arg0 : i32, i32
  }
}

</mosaic_0001>

<llo_original>
// kernel: agent_forward.1
$region0: #{agent_forward.1}
  #allocation0 [shape = 'u32[]', space=smem, size = 0x4, offset = 0x4, fixed_abs, tag = 'smem constant byte address 0x4 - core index']
  #allocation1 [shape = 'u32[144,128]{1,0:T(1,128)}', space=vmem, size = 0x12000, scoped, tag = 'internal scratch']
  %s0 = inlined_call_operand.vmem [shape: f32[128,11], index: 0, kind: input, shape index: {}]
  %s1 = inlined_call_operand.vmem [shape: bf16[50,11], index: 1, kind: input, shape index: {}]
  %s2 = inlined_call_operand.vmem [shape: f32[50,1], index: 2, kind: input, shape index: {}]
  %s3 = inlined_call_operand.vmem [shape: bf16[50,50], index: 3, kind: input, shape index: {}]
  %s4 = inlined_call_operand.vmem [shape: f32[50,1], index: 4, kind: input, shape index: {}]
  %s5 = inlined_call_operand.vmem [shape: bf16[2,50], index: 5, kind: input, shape index: {}]
  %s6 = inlined_call_operand.vmem [shape: f32[2,1], index: 6, kind: input, shape index: {}]
  %s7 = inlined_call_operand.vmem [shape: f32[2,128], index: 7, kind: output, shape index: {}]
  %s8 = sld [smem:[#allocation0]]
  $region38: #{agent_forward.1} parent=0
    _
  %s10 = ssub.s32 1, %s8
  %s11 = scalar_select 0, %s10, %s8
  // Predicated region
  $region2: #{agent_forward.1} parent=0 // pred_check
    _
  $region3: #{agent_forward.1} parent=0 // pred_check_branch
    %13 = sbr.rel (0) target = $region5
  $region4: #{agent_forward.1} parent=0 // pred_region
    _
  $region5: #{agent_forward.1} parent=0 // pred_fallthru
    _
  // Predicated region
  $region6: #{agent_forward.1} parent=0 // pred_check
    _
  $region7: #{agent_forward.1} parent=0 // pred_check_branch
    %15 = sbr.rel (0) target = $region9
  $region8: #{agent_forward.1} parent=0 // pred_region
    _
  $region9: #{agent_forward.1} parent=0 // pred_fallthru
    _
  // Predicated region
  $region10: #{agent_forward.1} parent=0 // pred_check
    _
  $region11: #{agent_forward.1} parent=0 // pred_check_branch
    %17 = sbr.rel (0) target = $region13
  $region12: #{agent_forward.1} parent=0 // pred_region
    _
  $region13: #{agent_forward.1} parent=0 // pred_fallthru
    _
  // Predicated region
  $region14: #{agent_forward.1} parent=0 // pred_check
    _
  $region15: #{agent_forward.1} parent=0 // pred_check_branch
    %19 = sbr.rel (0) target = $region17
  $region16: #{agent_forward.1} parent=0 // pred_region
    _
  $region17: #{agent_forward.1} parent=0 // pred_fallthru
    _
  // Predicated region
  $region18: #{agent_forward.1} parent=0 // pred_check
    _
  $region19: #{agent_forward.1} parent=0 // pred_check_branch
    %21 = sbr.rel (0) target = $region21
  $region20: #{agent_forward.1} parent=0 // pred_region
    _
  $region21: #{agent_forward.1} parent=0 // pred_fallthru
    _
  // Predicated region
  $region22: #{agent_forward.1} parent=0 // pred_check
    _
  $region23: #{agent_forward.1} parent=0 // pred_check_branch
    %23 = sbr.rel (0) target = $region25
  $region24: #{agent_forward.1} parent=0 // pred_region
    _
  $region25: #{agent_forward.1} parent=0 // pred_fallthru
    _
  // Predicated region
  $region26: #{agent_forward.1} parent=0 // pred_check
    _
  $region27: #{agent_forward.1} parent=0 // pred_check_branch
    %25 = sbr.rel (0) target = $region29
  $region28: #{agent_forward.1} parent=0 // pred_region
    _
  $region29: #{agent_forward.1} parent=0 // pred_fallthru
    _
  %v27 = vld [vmem:[%s0] sm:$0xff]
  %v28 = vld [vmem:[%s0 + $0x8] sm:$0xff]
  %v29 = vld [vmem:[%s0 + $0x10] sm:$0xff]
  %v30 = vld [vmem:[%s0 + $0x18] sm:$0xff]
  %v31 = vld [vmem:[%s0 + $0x20] sm:$0xff]
  %v32 = vld [vmem:[%s0 + $0x28] sm:$0xff]
  %v33 = vld [vmem:[%s0 + $0x30] sm:$0xff]
  %v34 = vld [vmem:[%s0 + $0x38] sm:$0xff]
  %v35 = vld [vmem:[%s0 + $0x40] sm:$0xff]
  %v36 = vld [vmem:[%s0 + $0x48] sm:$0xff]
  %v37 = vld [vmem:[%s0 + $0x50] sm:$0xff]
  %v38 = vld [vmem:[%s0 + $0x58] sm:$0xff]
  %v39 = vld [vmem:[%s0 + $0x60] sm:$0xff]
  %v40 = vld [vmem:[%s0 + $0x68] sm:$0xff]
  %v41 = vld [vmem:[%s0 + $0x70] sm:$0xff]
  %v42 = vld [vmem:[%s0 + $0x78] sm:$0xff]
  %v43 = vpack.c.bf16 %v28, %v27
  %v44 = vpack.c.bf16 %v30, %v29
  %v45 = vpack.c.bf16 %v32, %v31
  %v46 = vpack.c.bf16 %v34, %v33
  %v47 = vpack.c.bf16 %v36, %v35
  %v48 = vpack.c.bf16 %v38, %v37
  %v49 = vpack.c.bf16 %v40, %v39
  %v50 = vpack.c.bf16 %v42, %v41
  %v51 = vld [vmem:[%s1] sm:$0xf]
  %v52 = vld [vmem:[%s1 + $0x4] sm:$0xf]
  %v53 = vld [vmem:[%s1 + $0x8] sm:$0xf]
  %v54 = vld [vmem:[%s1 + $0xc] sm:$0xf]
  %v55 = vld [vmem:[%s1 + $0x10] sm:$0xf]
  %v56 = vld [vmem:[%s1 + $0x14] sm:$0xf]
  %v57 = vld [vmem:[%s1 + $0x18] sm:$0x1]
  %v58 = vld [vmem:[%s2] sm:$0xff]
  %v59 = vld [vmem:[%s2 + $0x8] sm:$0xff]
  %v60 = vld [vmem:[%s2 + $0x10] sm:$0xff]
  %v61 = vld [vmem:[%s2 + $0x18] sm:$0xff]
  %v62 = vld [vmem:[%s2 + $0x20] sm:$0xff]
  %v63 = vld [vmem:[%s2 + $0x28] sm:$0xff]
  %v64 = vld [vmem:[%s2 + $0x30] sm:$0x3]
  %66 = vset.pattern.permute.xlu0 0
  %67 = vperm.xlu0 %66, %v58
  %v68 = vpop.permute.xlu0 %67
  %71 = vset.pattern.permute.xlu0 0
  %72 = vperm.xlu0 %71, %v59
  %v73 = vpop.permute.xlu0 %72
  %76 = vset.pattern.permute.xlu0 0
  %77 = vperm.xlu0 %76, %v60
  %v78 = vpop.permute.xlu0 %77
  %81 = vset.pattern.permute.xlu0 0
  %82 = vperm.xlu0 %81, %v61
  %v83 = vpop.permute.xlu0 %82
  %86 = vset.pattern.permute.xlu0 0
  %87 = vperm.xlu0 %86, %v62
  %v88 = vpop.permute.xlu0 %87
  %91 = vset.pattern.permute.xlu0 0
  %92 = vperm.xlu0 %91, %v63
  %v93 = vpop.permute.xlu0 %92
  %96 = vset.pattern.permute.xlu0 0
  %97 = vperm.xlu0 %96, %v64
  %v98 = vpop.permute.xlu0 %97
  %v107 = vunpack.c.l.b16 %v51
  %v108 = vunpack.c.l.b16 %v52
  %v109 = vunpack.c.l.b16 %v53
  %v110 = vunpack.c.l.b16 %v54
  %v111 = vunpack.c.l.b16 %v55
  %v112 = vunpack.c.l.b16 %v56
  %v113 = vunpack.c.l.b16 %v57
  %v114 = vpack.c.b16 %v108, %v107
  %v115 = vpack.c.b16 %v110, %v109
  %v116 = vpack.c.b16 %v112, %v111
  %v117 = vpack.c.b16 %v113, %v113
  %vm118 = vcmask 89088
  %v120 = vsel %vm118, %v114, 0
  %v123 = vsel %vm118, %v115, 0
  %v126 = vsel %vm118, %v116, 0
  %v129 = vsel %vm118, %v117, 0
  %v132 = vsel %vm118, %v43, 0
  %v135 = vsel %vm118, %v44, 0
  %v138 = vsel %vm118, %v45, 0
  %v141 = vsel %vm118, %v46, 0
  %v144 = vsel %vm118, %v47, 0
  %v147 = vsel %vm118, %v48, 0
  %v150 = vsel %vm118, %v49, 0
  %v153 = vsel %vm118, %v50, 0
  %155 = vmatprep.subr.bf16.mxu0 0
  %156 = vmatpush1.bf16.xpose.msra.mxu0 %v132
  %157 = vmatprep.subr.bf16.mxu0 0
  %158 = vmatpush1.bf16.xpose.msra.mxu0 %v135
  %159 = vmatprep.subr.bf16.mxu0 0
  %160 = vmatpush1.bf16.xpose.msra.mxu0 %v138
  %161 = vmatprep.subr.bf16.mxu0 0
  %162 = vmatpush1.bf16.xpose.msra.mxu0 %v141
  %163 = vmatprep.subr.bf16.mxu0 0
  %164 = vmatpush1.bf16.xpose.msra.mxu0 %v144
  %165 = vmatprep.subr.bf16.mxu0 0
  %166 = vmatpush1.bf16.xpose.msra.mxu0 %v147
  %167 = vmatprep.subr.bf16.mxu0 0
  %168 = vmatpush1.bf16.xpose.msra.mxu0 %v150
  %169 = vmatprep.subr.bf16.mxu0 0
  %170 = vmatpush1.bf16.xpose.msra.mxu0 %v153
  %171 = vmatprep.subr.bf16.mxu0 0
  %172 = vmatpush1.bf16.xpose.msra.mxu0 0
  %173 = vmatprep.subr.bf16.mxu0 0
  %174 = vmatpush1.bf16.xpose.msra.mxu0 0
  %175 = vmatprep.subr.bf16.mxu0 0
  %176 = vmatpush1.bf16.xpose.msra.mxu0 0
  %177 = vmatprep.subr.bf16.mxu0 0
  %178 = vmatpush1.bf16.xpose.msra.mxu0 0
  %179 = vmatprep.subr.bf16.mxu0 0
  %180 = vmatpush1.bf16.xpose.msra.mxu0 0
  %181 = vmatprep.subr.bf16.mxu0 0
  %182 = vmatpush1.bf16.xpose.msra.mxu0 0
  %183 = vmatprep.subr.bf16.mxu0 0
  %184 = vmatpush1.bf16.xpose.msra.mxu0 0
  %185 = vmatprep.subr.bf16.mxu0 0
  %186 = vmatpush1.bf16.xpose.msra.mxu0 0
  %187 = vmatprep.mubr.bf16.mxu0 0
  %188 = vmatmul.mubr.bf16.gmra.mrb[0].mxu0 %v120
  %v189 = vpop.f32.mrb[0].mxu0
  %v190 = vadd.f32 %v68, %v189
  %v191 = vpop.f32.mrb[0].mxu0
  %v192 = vpop.f32.mrb[0].mxu0
  %v193 = vadd.f32 %v73, %v192
  %v194 = vpop.f32.mrb[0].mxu0
  %195 = vmatprep.mubr.bf16.mxu0 0
  %196 = vmatmul.mubr.bf16.gmra.mrb[0].mxu0 %v123
  %v197 = vpop.f32.mrb[0].mxu0
  %v198 = vadd.f32 %v78, %v197
  %v199 = vpop.f32.mrb[0].mxu0
  %v200 = vpop.f32.mrb[0].mxu0
  %v201 = vadd.f32 %v83, %v200
  %v202 = vpop.f32.mrb[0].mxu0
  %203 = vmatprep.mubr.bf16.mxu0 0
  %204 = vmatmul.mubr.bf16.gmra.mrb[0].mxu0 %v126
  %v205 = vpop.f32.mrb[0].mxu0
  %v206 = vadd.f32 %v88, %v205
  %v207 = vpop.f32.mrb[0].mxu0
  %v208 = vpop.f32.mrb[0].mxu0
  %v209 = vadd.f32 %v93, %v208
  %v210 = vpop.f32.mrb[0].mxu0
  %211 = vmatprep.mubr.bf16.mxu0 0
  %212 = vmatmul.mubr.bf16.gmra.mrb[0].mxu0 %v129
  %v213 = vpop.f32.mrb[0].mxu0
  %v214 = vadd.f32 %v98, %v213
  %v215 = vpop.f32.mrb[0].mxu0
  %v216 = vpop.f32.mrb[0].mxu0
  %v217 = vpop.f32.mrb[0].mxu0
  %218 = vdwg.mxu0
  %v219 = vmul.f32 %v190, 0.5
  %v220 = vmul.f32 %v193, 0.5
  %v221 = vmul.f32 %v198, 0.5
  %v222 = vmul.f32 %v201, 0.5
  %v223 = vmul.f32 %v206, 0.5
  %v224 = vmul.f32 %v209, 0.5
  %v225 = vmul.f32 %v214, 0.5
  %v226 = vtanh.pop %v219
  %v227 = vtanh.pop %v220
  %v228 = vtanh.pop %v221
  %v229 = vtanh.pop %v222
  %v230 = vtanh.pop %v223
  %v231 = vtanh.pop %v224
  %v232 = vtanh.pop %v225
  %v233 = vmul.f32 %v226, 0.5
  %v234 = vmul.f32 %v227, 0.5
  %v235 = vmul.f32 %v228, 0.5
  %v236 = vmul.f32 %v229, 0.5
  %v237 = vmul.f32 %v230, 0.5
  %v238 = vmul.f32 %v231, 0.5
  %v239 = vmul.f32 %v232, 0.5
  %v240 = vadd.f32 %v233, 0.5
  %v241 = vadd.f32 %v234, 0.5
  %v242 = vadd.f32 %v235, 0.5
  %v243 = vadd.f32 %v236, 0.5
  %v244 = vadd.f32 %v237, 0.5
  %v245 = vadd.f32 %v238, 0.5
  %v246 = vadd.f32 %v239, 0.5
  %v247 = vld [vmem:[%s3] sm:$0xf]
  %v248 = vld [vmem:[%s3 + $0x4] sm:$0xf]
  %v249 = vld [vmem:[%s3 + $0x8] sm:$0xf]
  %v250 = vld [vmem:[%s3 + $0xc] sm:$0xf]
  %v251 = vld [vmem:[%s3 + $0x10] sm:$0xf]
  %v252 = vld [vmem:[%s3 + $0x14] sm:$0xf]
  %v253 = vld [vmem:[%s3 + $0x18] sm:$0x1]
  %v254 = vpack.c.bf16 %v241, %v240
  %v255 = vpack.c.bf16 %v243, %v242
  %v256 = vpack.c.bf16 %v245, %v244
  %v257 = vpack.c.bf16 %v246, %v246
  %v258 = vld [vmem:[%s4] sm:$0xff]
  %v259 = vld [vmem:[%s4 + $0x8] sm:$0xff]
  %v260 = vld [vmem:[%s4 + $0x10] sm:$0xff]
  %v261 = vld [vmem:[%s4 + $0x18] sm:$0xff]
  %v262 = vld [vmem:[%s4 + $0x20] sm:$0xff]
  %v263 = vld [vmem:[%s4 + $0x28] sm:$0xff]
  %v264 = vld [vmem:[%s4 + $0x30] sm:$0x3]
  %266 = vset.pattern.permute.xlu0 0
  %267 = vperm.xlu0 %266, %v258
  %v268 = vpop.permute.xlu0 %267
  %271 = vset.pattern.permute.xlu0 0
  %272 = vperm.xlu0 %271, %v259
  %v273 = vpop.permute.xlu0 %272
  %276 = vset.pattern.permute.xlu0 0
  %277 = vperm.xlu0 %276, %v260
  %v278 = vpop.permute.xlu0 %277
  %281 = vset.pattern.permute.xlu0 0
  %282 = vperm.xlu0 %281, %v261
  %v283 = vpop.permute.xlu0 %282
  %286 = vset.pattern.permute.xlu0 0
  %287 = vperm.xlu0 %286, %v262
  %v288 = vpop.permute.xlu0 %287
  %291 = vset.pattern.permute.xlu0 0
  %292 = vperm.xlu0 %291, %v263
  %v293 = vpop.permute.xlu0 %292
  %296 = vset.pattern.permute.xlu0 0
  %297 = vperm.xlu0 %296, %v264
  %v298 = vpop.permute.xlu0 %297
  %v307 = vunpack.c.l.b16 %v247
  %v308 = vunpack.c.l.b16 %v248
  %v309 = vunpack.c.l.b16 %v249
  %v310 = vunpack.c.l.b16 %v250
  %v311 = vunpack.c.l.b16 %v251
  %v312 = vunpack.c.l.b16 %v252
  %v313 = vunpack.c.l.b16 %v253
  %v314 = vpack.c.b16 %v308, %v307
  %v315 = vpack.c.b16 %v310, %v309
  %v316 = vpack.c.b16 %v312, %v311
  %v317 = vpack.c.b16 %v313, %v313
  %vm318 = vcmask 408576
  %v320 = vsel %vm318, %v314, 0
  %v323 = vsel %vm318, %v315, 0
  %v326 = vsel %vm318, %v316, 0
  %v329 = vsel %vm318, %v317, 0
  %vm331 = vcmask 1040384
  %v333 = vsel %vm331, %v257, 0
  %335 = vmatprep.subr.bf16.mxu0 0
  %336 = vmatpush1.bf16.msra.mxu0 %v254
  %337 = vmatprep.subr.bf16.mxu0 0
  %338 = vmatpush1.bf16.msra.mxu0 %v255
  %339 = vmatprep.subr.bf16.mxu0 0
  %340 = vmatpush1.bf16.msra.mxu0 %v256
  %341 = vmatprep.subr.bf16.mxu0 0
  %342 = vmatpush1.bf16.msra.mxu0 %v333
  %343 = vmatprep.subr.bf16.mxu0 0
  %344 = vmatpush1.bf16.msra.mxu0 0
  %345 = vmatprep.subr.bf16.mxu0 0
  %346 = vmatpush1.bf16.msra.mxu0 0
  %347 = vmatprep.subr.bf16.mxu0 0
  %348 = vmatpush1.bf16.msra.mxu0 0
  %349 = vmatprep.subr.bf16.mxu0 0
  %350 = vmatpush1.bf16.msra.mxu0 0
  %351 = vmatprep.subr.bf16.mxu0 0
  %352 = vmatpush1.bf16.msra.mxu0 0
  %353 = vmatprep.subr.bf16.mxu0 0
  %354 = vmatpush1.bf16.msra.mxu0 0
  %355 = vmatprep.subr.bf16.mxu0 0
  %356 = vmatpush1.bf16.msra.mxu0 0
  %357 = vmatprep.subr.bf16.mxu0 0
  %358 = vmatpush1.bf16.msra.mxu0 0
  %359 = vmatprep.subr.bf16.mxu0 0
  %360 = vmatpush1.bf16.msra.mxu0 0
  %361 = vmatprep.subr.bf16.mxu0 0
  %362 = vmatpush1.bf16.msra.mxu0 0
  %363 = vmatprep.subr.bf16.mxu0 0
  %364 = vmatpush1.bf16.msra.mxu0 0
  %365 = vmatprep.subr.bf16.mxu0 0
  %366 = vmatpush1.bf16.msra.mxu0 0
  %367 = vmatprep.mubr.bf16.mxu0 0
  %368 = vmatmul.mubr.bf16.gmra.mrb[0].mxu0 %v320
  %v369 = vpop.f32.mrb[0].mxu0
  %v370 = vadd.f32 %v268, %v369
  %v371 = vpop.f32.mrb[0].mxu0
  %v372 = vpop.f32.mrb[0].mxu0
  %v373 = vadd.f32 %v273, %v372
  %v374 = vpop.f32.mrb[0].mxu0
  %375 = vmatprep.mubr.bf16.mxu0 0
  %376 = vmatmul.mubr.bf16.gmra.mrb[0].mxu0 %v323
  %v377 = vpop.f32.mrb[0].mxu0
  %v378 = vadd.f32 %v278, %v377
  %v379 = vpop.f32.mrb[0].mxu0
  %v380 = vpop.f32.mrb[0].mxu0
  %v381 = vadd.f32 %v283, %v380
  %v382 = vpop.f32.mrb[0].mxu0
  %383 = vmatprep.mubr.bf16.mxu0 0
  %384 = vmatmul.mubr.bf16.gmra.mrb[0].mxu0 %v326
  %v385 = vpop.f32.mrb[0].mxu0
  %v386 = vadd.f32 %v288, %v385
  %v387 = vpop.f32.mrb[0].mxu0
  %v388 = vpop.f32.mrb[0].mxu0
  %v389 = vadd.f32 %v293, %v388
  %v390 = vpop.f32.mrb[0].mxu0
  %391 = vmatprep.mubr.bf16.mxu0 0
  %392 = vmatmul.mubr.bf16.gmra.mrb[0].mxu0 %v329
  %v393 = vpop.f32.mrb[0].mxu0
  %v394 = vadd.f32 %v298, %v393
  %v395 = vpop.f32.mrb[0].mxu0
  %v396 = vpop.f32.mrb[0].mxu0
  %v397 = vpop.f32.mrb[0].mxu0
  %398 = vdwg.mxu0
  %v399 = vmul.f32 %v370, 0.5
  %v400 = vmul.f32 %v373, 0.5
  %v401 = vmul.f32 %v378, 0.5
  %v402 = vmul.f32 %v381, 0.5
  %v403 = vmul.f32 %v386, 0.5
  %v404 = vmul.f32 %v389, 0.5
  %v405 = vmul.f32 %v394, 0.5
  %v406 = vtanh.pop %v399
  %v407 = vtanh.pop %v400
  %v408 = vtanh.pop %v401
  %v409 = vtanh.pop %v402
  %v410 = vtanh.pop %v403
  %v411 = vtanh.pop %v404
  %v412 = vtanh.pop %v405
  %v413 = vmul.f32 %v406, 0.5
  %v414 = vmul.f32 %v407, 0.5
  %v415 = vmul.f32 %v408, 0.5
  %v416 = vmul.f32 %v409, 0.5
  %v417 = vmul.f32 %v410, 0.5
  %v418 = vmul.f32 %v411, 0.5
  %v419 = vmul.f32 %v412, 0.5
  %v420 = vadd.f32 %v413, 0.5
  %v421 = vadd.f32 %v414, 0.5
  %v422 = vadd.f32 %v415, 0.5
  %v423 = vadd.f32 %v416, 0.5
  %v424 = vadd.f32 %v417, 0.5
  %v425 = vadd.f32 %v418, 0.5
  %v426 = vadd.f32 %v419, 0.5
  %v427 = vld [vmem:[%s5] sm:$0x1]
  %v428 = vpack.c.bf16 %v421, %v420
  %v429 = vpack.c.bf16 %v423, %v422
  %v430 = vpack.c.bf16 %v425, %v424
  %v431 = vpack.c.bf16 %v426, %v426
  %v432 = vld [vmem:[%s6] sm:$0x3]
  %434 = vset.pattern.permute.xlu0 0
  %435 = vperm.xlu0 %434, %v432
  %v436 = vpop.permute.xlu0 %435
  %v439 = vsel %vm318, %v427, 0
  %v442 = vsel %vm331, %v431, 0
  %444 = vmatprep.subr.bf16.mxu0 0
  %445 = vmatpush1.bf16.msra.mxu0 %v428
  %446 = vmatprep.subr.bf16.mxu0 0
  %447 = vmatpush1.bf16.msra.mxu0 %v429
  %448 = vmatprep.subr.bf16.mxu0 0
  %449 = vmatpush1.bf16.msra.mxu0 %v430
  %450 = vmatprep.subr.bf16.mxu0 0
  %451 = vmatpush1.bf16.msra.mxu0 %v442
  %452 = vmatprep.subr.bf16.mxu0 0
  %453 = vmatpush1.bf16.msra.mxu0 0
  %454 = vmatprep.subr.bf16.mxu0 0
  %455 = vmatpush1.bf16.msra.mxu0 0
  %456 = vmatprep.subr.bf16.mxu0 0
  %457 = vmatpush1.bf16.msra.mxu0 0
  %458 = vmatprep.subr.bf16.mxu0 0
  %459 = vmatpush1.bf16.msra.mxu0 0
  %460 = vmatprep.subr.bf16.mxu0 0
  %461 = vmatpush1.bf16.msra.mxu0 0
  %462 = vmatprep.subr.bf16.mxu0 0
  %463 = vmatpush1.bf16.msra.mxu0 0
  %464 = vmatprep.subr.bf16.mxu0 0
  %465 = vmatpush1.bf16.msra.mxu0 0
  %466 = vmatprep.subr.bf16.mxu0 0
  %467 = vmatpush1.bf16.msra.mxu0 0
  %468 = vmatprep.subr.bf16.mxu0 0
  %469 = vmatpush1.bf16.msra.mxu0 0
  %470 = vmatprep.subr.bf16.mxu0 0
  %471 = vmatpush1.bf16.msra.mxu0 0
  %472 = vmatprep.subr.bf16.mxu0 0
  %473 = vmatpush1.bf16.msra.mxu0 0
  %474 = vmatprep.subr.bf16.mxu0 0
  %475 = vmatpush1.bf16.msra.mxu0 0
  %476 = vmatprep.mubr.bf16.mxu0 0
  %477 = vmatmul.mubr.bf16.gmra.mrb[0].mxu0 %v439
  %v478 = vpop.f32.mrb[0].mxu0
  %v479 = vadd.f32 %v436, %v478
  %v480 = vpop.f32.mrb[0].mxu0
  %v481 = vpop.f32.mrb[0].mxu0
  %v482 = vpop.f32.mrb[0].mxu0
  %483 = vdwg.mxu0
  %484 = vst [vmem:[%s7] sm:$0x3] %v479
  // Predicated region
  $region30: #{agent_forward.1} parent=0 // pred_check
    _
  $region31: #{agent_forward.1} parent=0 // pred_check_branch
    %486 = sbr.rel (0) target = $region33
  $region32: #{agent_forward.1} parent=0 // pred_region
    _
  $region33: #{agent_forward.1} parent=0 // pred_fallthru
    _
  // Predicated region
  $region34: #{agent_forward.1} parent=0 // pred_check
    _
  $region35: #{agent_forward.1} parent=0 // pred_check_branch
    %488 = sbr.rel (0) target = $region37
  $region36: #{agent_forward.1} parent=0 // pred_region
    _
  $region37: #{agent_forward.1} parent=0 // pred_fallthru
    _

</llo_original>
